<compile_context>
chip_gen: v7x
topology: tpu7x:2x2x1
jax: 0.10.0
libtpu: 0.0.40
codegen_flags: <defaults>
</compile_context>

<pallas_src>
import functools
import math

import numpy as np
import jax
import jax.numpy as jnp
from jax.experimental import pallas as pl
from jax.experimental.pallas import tpu as pltpu


# ---------------------------------------------------------------------------
# Pallas kernel: one image per grid step, a single MXU matmul + bias.
# ---------------------------------------------------------------------------
def _eq_conv2d_kernel(x_ref, w_ref, b_ref, o_ref):
    """x_ref: (1, K*K*C_in, M)  im2col'd image, contraction axis in sublanes,
                                 spatial axis M = H_out * W_pad in lanes
    w_ref: (C_out, K*K*C_in)    pre-scaled, tap-major / C_in-inner
    b_ref: (C_out, 1)
    o_ref: (1, C_out, M)        channel-major output rows (junk cols cropped
                                 in the wrapper)."""
    acc = jnp.dot(w_ref[...], x_ref[0], preferred_element_type=jnp.float32)
    o_ref[0] = (acc + b_ref[...]).astype(o_ref.dtype)


# ---------------------------------------------------------------------------
# Wrapper: host-side layout plumbing (pad, channel-major im2col) + pallas_call.
# ---------------------------------------------------------------------------
def equalized_conv2d(x: jax.Array, w_hat: jax.Array, bias: jax.Array,
                     *, padding: int = 0) -> jax.Array:
    """x: (N, C_in, H, W); w_hat: (C_out, C_in, K, K); bias: (C_out,)."""
    n, c_in, h, w = x.shape
    c_out, c_in_w, k, k2 = w_hat.shape
    assert c_in == c_in_w and k == k2

    h_pad, w_pad = h + 2 * padding, w + 2 * padding
    h_out, w_out = h_pad - k + 1, w_pad - k + 1
    m = h_out * w_pad                      # full-width output rows (crop later)
    kkc = k * k * c_in

    # Equalized learning-rate scaling (identical to the module's w_hat * c).
    c = 1.0 / math.sqrt(c_in * k * k)

    # Zero-pad spatially, keep channel-major, flatten spatial to one axis and
    # add a K-1 tail so every tap's contiguous window stays in bounds.
    xp = jnp.pad(x, ((0, 0), (0, 0), (padding, padding), (padding, padding)))
    x_flat = xp.reshape(n, c_in, h_pad * w_pad)
    if k > 1:
        x_flat = jnp.pad(x_flat, ((0, 0), (0, 0), (0, k - 1)))

    # im2col: stack the K*K shifted views so the kernel's contraction depth is
    # K*K*C_in and the conv is a single matmul per image.  (tap-major, C_in
    # inner -> must match the weight reshape below.)
    taps = [x_flat[:, :, ki * w_pad + kj: ki * w_pad + kj + m]
            for ki in range(k) for kj in range(k)]
    x_im2col = jnp.stack(taps, axis=1).reshape(n, kkc, m)

    # Weight -> (C_out, K*K*C_in), pre-scaled, same (ki, kj, c_in) ordering.
    w_r = (jnp.transpose(w_hat * c, (0, 2, 3, 1))
           .reshape(c_out, kkc).astype(jnp.float32))
    b_r = bias.reshape(c_out, 1).astype(jnp.float32)

    out_flat = pl.pallas_call(
        _eq_conv2d_kernel,
        out_shape=jax.ShapeDtypeStruct((n, c_out, m), x.dtype),
        grid_spec=pltpu.PrefetchScalarGridSpec(
            num_scalar_prefetch=0,
            grid=(n,),
            in_specs=[
                pl.BlockSpec((1, kkc, m), lambda i: (i, 0, 0)),
                pl.BlockSpec((c_out, kkc), lambda i: (0, 0)),
                pl.BlockSpec((c_out, 1), lambda i: (0, 0)),
            ],
            out_specs=pl.BlockSpec((1, c_out, m), lambda i: (i, 0, 0)),
        ),
        compiler_params=pltpu.CompilerParams(
            dimension_semantics=("parallel",)),   # v7x: batch split across TCs
    )(x_im2col, w_r, b_r)

    # Un-flatten rows, drop the K-1 wrapped junk columns.  Already NCHW.
    return out_flat.reshape(n, c_out, h_out, w_pad)[:, :, :, :w_out]


# ---------------------------------------------------------------------------
# Pure numpy reference (matches F.conv2d semantics) for a sanity check.
# ---------------------------------------------------------------------------
def ref_equalized_conv2d(x_np, w_hat_np, bias_np, padding):
    n, c_in, h, w = x_np.shape
    c_out, _, k, _ = w_hat_np.shape
    c = 1.0 / math.sqrt(c_in * k * k)
    wgt = (w_hat_np.astype(np.float64)) * c
    xp = np.pad(x_np.astype(np.float64),
                ((0, 0), (0, 0), (padding, padding), (padding, padding)))
    h_out = h + 2 * padding - k + 1
    w_out = w + 2 * padding - k + 1
    out = np.zeros((n, c_out, h_out, w_out), np.float64)
    for ki in range(k):
        for kj in range(k):
            out += np.einsum("oc,nchw->nohw", wgt[:, :, ki, kj],
                             xp[:, :, ki:ki + h_out, kj:kj + w_out])
    out += bias_np.astype(np.float64)[None, :, None, None]
    return out.astype(np.float32)


if __name__ == "__main__":
    key = jax.random.PRNGKey(0)
    k_x, k_w = jax.random.split(key)

    N, C_IN, H, W = 2, 4, 16, 16
    C_OUT, K, PAD = 8, 3, 1

    x = jax.random.normal(k_x, (N, C_IN, H, W), dtype=jnp.float32)
    w_hat = jax.random.normal(k_w, (C_OUT, C_IN, K, K), dtype=jnp.float32)
    bias = jnp.ones((C_OUT,), dtype=jnp.float32)     # module inits bias to ones

    out = equalized_conv2d(x, w_hat, bias, padding=PAD)
    out = jax.block_until_ready(out)

    expected = ref_equalized_conv2d(np.asarray(x), np.asarray(w_hat),
                                    np.asarray(bias), PAD)
    assert out.shape == (N, C_OUT, H, W), out.shape
    np.testing.assert_allclose(np.asarray(out), expected, rtol=1e-4, atol=1e-4)

    print("KERNEL_OK")
</pallas_src>

<mosaic_0001>
module attributes {stable_mosaic.version = 11 : i64} {
  func.func @_eq_conv2d_kernel(%arg0: i32, %arg1: memref<1x36x288xf32, #tpu.memory_space<vmem>>, %arg2: memref<8x36xf32, #tpu.memory_space<vmem>>, %arg3: memref<8x1xf32, #tpu.memory_space<vmem>>, %arg4: memref<1x8x288xf32, #tpu.memory_space<vmem>>) attributes {dimension_semantics = [#tpu.dimension_semantics<parallel>], iteration_bounds = array<i64: 2>, scalar_prefetch = 0 : i64, scratch_operands = 0 : i64, tpu.core_type = #tpu.core_type<tc>, window_params = [{transform_indices = @transform_0, window_bounds = array<i64: 1, 36, 288>}, {pipeline_mode = #tpu.pipeline_mode<synchronous>, transform_indices = @transform_1, window_bounds = array<i64: 8, 36>}, {pipeline_mode = #tpu.pipeline_mode<synchronous>, transform_indices = @transform_2, window_bounds = array<i64: 8, 1>}, {transform_indices = @transform_3, window_bounds = array<i64: 1, 8, 288>}]} {
    %c0 = arith.constant 0 : index
    %c0_0 = arith.constant 0 : index
    %0 = vector.load %arg2[%c0, %c0_0] : memref<8x36xf32, #tpu.memory_space<vmem>>, vector<8x36xf32>
    %c0_1 = arith.constant 0 : index
    %c0_2 = arith.constant 0 : index
    %c0_3 = arith.constant 0 : index
    %1 = vector.load %arg1[%c0_1, %c0_2, %c0_3] : memref<1x36x288xf32, #tpu.memory_space<vmem>>, vector<1x36x288xf32>
    %2 = vector.shape_cast %1 : vector<1x36x288xf32> to vector<36x288xf32>
    %cst = arith.constant dense<0.000000e+00> : vector<8x288xf32>
    %3 = tpu.matmul %0, %2, %cst {dimension_numbers = #tpu.dot_dimension_numbers<[1], [0], [0], [1], [0, 0, 1, 1], [], []>} : vector<8x36xf32>, vector<36x288xf32>, vector<8x288xf32> -> vector<8x288xf32>
    %c0_4 = arith.constant 0 : index
    %c0_5 = arith.constant 0 : index
    %4 = vector.load %arg3[%c0_4, %c0_5] : memref<8x1xf32, #tpu.memory_space<vmem>>, vector<8x1xf32>
    %5 = vector.broadcast %4 : vector<8x1xf32> to vector<8x288xf32>
    %6 = arith.addf %3, %5 : vector<8x288xf32>
    %c0_6 = arith.constant 0 : index
    %c0_7 = arith.constant 0 : index
    %c0_8 = arith.constant 0 : index
    %7 = vector.load %arg4[%c0_6, %c0_7, %c0_8] : memref<1x8x288xf32, #tpu.memory_space<vmem>>, vector<1x8x288xf32>
    %8 = vector.shape_cast %7 : vector<1x8x288xf32> to vector<8x288xf32>
    %9 = vector.shape_cast %6 : vector<8x288xf32> to vector<1x8x288xf32>
    tpu.vector_store %arg4[%c0_6, %c0_7, %c0_8], %9 {strides = array<i32>} : memref<1x8x288xf32, #tpu.memory_space<vmem>>, vector<1x8x288xf32>,
    return
  }
  func.func @transform_0(%arg0: i32) -> (i32, i32, i32) {
    %c0_i32 = arith.constant 0 : i32
    %c0_i32_0 = arith.constant 0 : i32
    %c0_i32_1 = arith.constant 0 : i32
    return %arg0, %c0_i32, %c0_i32_0 : i32, i32, i32
  }
  func.func @transform_1(%arg0: i32) -> (i32, i32) {
    %c0_i32 = arith.constant 0 : i32
    %c0_i32_0 = arith.constant 0 : i32
    %c0_i32_1 = arith.constant 0 : i32
    return %c0_i32, %c0_i32_0 : i32, i32
  }
  func.func @transform_2(%arg0: i32) -> (i32, i32) {
    %c0_i32 = arith.constant 0 : i32
    %c0_i32_0 = arith.constant 0 : i32
    %c0_i32_1 = arith.constant 0 : i32
    return %c0_i32, %c0_i32_0 : i32, i32
  }
  func.func @transform_3(%arg0: i32) -> (i32, i32, i32) {
    %c0_i32 = arith.constant 0 : i32
    %c0_i32_0 = arith.constant 0 : i32
    %c0_i32_1 = arith.constant 0 : i32
    return %arg0, %c0_i32, %c0_i32_0 : i32, i32, i32
  }
}

</mosaic_0001>

<llo_original>
// kernel: tpu_custom_call.1
$region0: #{tpu_custom_call.1}
  #allocation0 [shape = 'u32[]', space=smem, size = 0x4, offset = 0x4, fixed_abs, tag = 'smem constant byte address 0x4 - core index']
  #allocation1 [shape = 'u32[144,128]{1,0:T(1,128)}', space=vmem, size = 0x12000, scoped, tag = 'internal scratch']
  %s0 = inlined_call_operand.vmem [shape: f32[2,36,288], index: 0, kind: input, shape index: {}]
  %s1 = inlined_call_operand.vmem [shape: f32[8,36], index: 1, kind: input, shape index: {}]
  %s2 = inlined_call_operand.vmem [shape: f32[8,1], index: 2, kind: input, shape index: {}]
  %s3 = inlined_call_operand.hbm [shape: f32[2,8,288], index: 3, kind: output, shape index: {}]
  %s4 = sld [smem:[#allocation0]]
  $region45: #{tpu_custom_call.1} parent=0
    _
  %s6 = ssub.s32 1, %s4
  %s7 = scalar_select 0, %s6, %s4
  $region1: #{tpu_custom_call.1} parent=0
    #allocation2 [shape = 'u8[24576]{0}', space=vmem, size = 0x6000, scoped, tag = 'output window, operand 0']
    #allocation3 [shape = 's32[2]{0}', space=sflag, size = 0x8, scoped, tag = 'scoped memory for tpu_custom_call.1']
    %8 = vsyncpa [#allocation3], 0
    %s9 = scalar_lea.sflag [#allocation3], 1
    %10 = vsyncpa %s9, 0
    loop: start=0, step=1, limit=4
    $region2: #{tpu_custom_call.1} parent=1 // loop_pre_header
      _
    $region3: #{tpu_custom_call.1} parent=1 // loop_header
      %s12 = sphi 0, %s16
      %p13 = scmp.ge.s32.totalorder %s12, 4
      %s22 = sphi 0, %s24
      %s25 = sphi 0, %s22
      %s26 = sphi 0, %s25
      %s42 = sphi 0, %s26
      %s46 = sphi 0, %s46
      %s48 = sphi 0, %s46
      %s49 = sphi 0, %s48
      %s63 = sphi 0, %s49
      %s67 = sphi 0, %s67
      %s69 = sphi 0, %s67
      %s70 = sphi 0, %s69
      %s84 = sphi 0, %s70
      %s90 = sphi 0, %s92
      %s93 = sphi 0, %s90
      %s94 = sphi 0, %s93
      %s110 = sphi 0, %s94
    $region4: #{tpu_custom_call.1} parent=1 // loop_header_branch
      %15 = sbr.rel (%p13) target = $region8
    $region5: #{tpu_custom_call.1} parent=1 // loop_body
      %s17 = ssub.s32 %s12, 1
      %s18 = ssub.s32 %s12, 2
      %s19 = sadd.s32 %s12, 1
      %s20 = ssub.s32 %s12, %s19
      %p21 = scmp.eq.s32.totalorder %s20, 0
      %s23 = sadd.s32 %s22, 1
      %s24 = scalar_select %p21, %s22, %s23
      %p27 = pneg %p21
      %p28 = scmp.eq.s32.totalorder %s12, 1
      %p29 = por %p27, %p28
      %p30 = scmp.ne.s32.totalorder %s22, %s25
      %p31 = scmp.eq.s32.totalorder %s12, 0
      %p32 = por %p30, %p31
      %p33 = scmp.ne.s32.totalorder %s22, %s25
      %p34 = scmp.eq.s32.totalorder %s17, 1
      %p35 = por %p33, %p34
      %p36 = scmp.ne.s32.totalorder %s25, %s26
      %p37 = scmp.eq.s32.totalorder %s17, 0
      %p38 = por %p36, %p37
      %p39 = scmp.ne.s32.totalorder %s25, %s26
      %p40 = scmp.eq.s32.totalorder %s18, 1
      %p41 = por %p39, %p40
      %p43 = scmp.ne.s32.totalorder %s26, %s42
      %p44 = scmp.eq.s32.totalorder %s18, 0
      %p45 = por %p43, %p44
      %s47 = sadd.s32 %s46, 1
      %p50 = scmp.eq.s32.totalorder %s12, 1
      %p51 = scmp.ne.s32.totalorder %s46, %s48
      %p52 = scmp.eq.s32.totalorder %s12, 0
      %p53 = por %p51, %p52
      %p54 = scmp.ne.s32.totalorder %s46, %s48
      %p55 = scmp.eq.s32.totalorder %s17, 1
      %p56 = por %p54, %p55
      %p57 = scmp.ne.s32.totalorder %s48, %s49
      %p58 = scmp.eq.s32.totalorder %s17, 0
      %p59 = por %p57, %p58
      %p60 = scmp.ne.s32.totalorder %s48, %s49
      %p61 = scmp.eq.s32.totalorder %s18, 1
      %p62 = por %p60, %p61
      %p64 = scmp.ne.s32.totalorder %s49, %s63
      %p65 = scmp.eq.s32.totalorder %s18, 0
      %p66 = por %p64, %p65
      %s68 = sadd.s32 %s67, 1
      %p71 = scmp.eq.s32.totalorder %s12, 1
      %p72 = scmp.ne.s32.totalorder %s67, %s69
      %p73 = scmp.eq.s32.totalorder %s12, 0
      %p74 = por %p72, %p73
      %p75 = scmp.ne.s32.totalorder %s67, %s69
      %p76 = scmp.eq.s32.totalorder %s17, 1
      %p77 = por %p75, %p76
      %p78 = scmp.ne.s32.totalorder %s69, %s70
      %p79 = scmp.eq.s32.totalorder %s17, 0
      %p80 = por %p78, %p79
      %p81 = scmp.ne.s32.totalorder %s69, %s70
      %p82 = scmp.eq.s32.totalorder %s18, 1
      %p83 = por %p81, %p82
      %p85 = scmp.ne.s32.totalorder %s70, %s84
      %p86 = scmp.eq.s32.totalorder %s18, 0
      %p87 = por %p85, %p86
      %s88 = ssub.s32 %s12, %s19
      %p89 = scmp.eq.s32.totalorder %s88, 0
      %s91 = sadd.s32 %s90, 1
      %s92 = scalar_select %p89, %s90, %s91
      %p95 = pneg %p89
      %p96 = scmp.eq.s32.totalorder %s12, 1
      %p97 = por %p95, %p96
      %p98 = scmp.ne.s32.totalorder %s90, %s93
      %p99 = scmp.eq.s32.totalorder %s12, 0
      %p100 = por %p98, %p99
      %p101 = scmp.ne.s32.totalorder %s90, %s93
      %p102 = scmp.eq.s32.totalorder %s17, 1
      %p103 = por %p101, %p102
      %p104 = scmp.ne.s32.totalorder %s93, %s94
      %p105 = scmp.eq.s32.totalorder %s17, 0
      %p106 = por %p104, %p105
      %p107 = scmp.ne.s32.totalorder %s93, %s94
      %p108 = scmp.eq.s32.totalorder %s18, 1
      %p109 = por %p107, %p108
      %p111 = scmp.ne.s32.totalorder %s94, %s110
      %p112 = scmp.eq.s32.totalorder %s18, 0
      %p113 = por %p111, %p112
      %p114 = scmp.le.s32.totalorder 1, %s12
      %p115 = scmp.lt.s32.totalorder %s12, 3
      %p116 = pnand %p114, %p115
      %p117 = pneg %p116
      // Predicated region
      $region9: #{tpu_custom_call.1} parent=5 // pred_check
        _
      $region10: #{tpu_custom_call.1} parent=5 // pred_check_branch
        %119 = sbr.rel (%p116) target = $region12
      $region11: #{tpu_custom_call.1} parent=5 // pred_region
        %s120 = ssub.s32 %s12, 1
        // Predicated region
        $region13: #{tpu_custom_call.1} parent=11 // pred_check
          %p121 = pneg %p59
        $region14: #{tpu_custom_call.1} parent=11 // pred_check_branch
          %123 = sbr.rel (%p121) target = $region16
        $region15: #{tpu_custom_call.1} parent=11 // pred_region
          _
        $region16: #{tpu_custom_call.1} parent=11 // pred_fallthru
          _
        // Predicated region
        $region17: #{tpu_custom_call.1} parent=11 // pred_check
          %p124 = pneg %p80
        $region18: #{tpu_custom_call.1} parent=11 // pred_check_branch
          %126 = sbr.rel (%p124) target = $region20
        $region19: #{tpu_custom_call.1} parent=11 // pred_region
          _
        $region20: #{tpu_custom_call.1} parent=11 // pred_fallthru
          _
      $region12: #{tpu_custom_call.1} parent=5 // pred_fallthru
        _
      %p127 = scmp.lt.s32.totalorder %s12, 2
      // Predicated region
      $region21: #{tpu_custom_call.1} parent=5 // pred_check
        %p128 = pneg %p127
      $region22: #{tpu_custom_call.1} parent=5 // pred_check_branch
        %130 = sbr.rel (%p128) target = $region24
      $region23: #{tpu_custom_call.1} parent=5 // pred_region
        // Predicated region
        $region25: #{tpu_custom_call.1} parent=23 // pred_check
          %p131 = pneg %p32
        $region26: #{tpu_custom_call.1} parent=23 // pred_check_branch
          %133 = sbr.rel (%p131) target = $region28
        $region27: #{tpu_custom_call.1} parent=23 // pred_region
          %p134 = scmp.lt.s32.totalorder %s12, 1
          %s135 = scalar_select %p134, %s12, 1
          %s136 = smul.addr %s135, 15
          %s137 = smul.addr %s136, 8
          %s138 = scalar_lea.vmem %s0, %s137
        $region28: #{tpu_custom_call.1} parent=23 // pred_fallthru
          _
      $region24: #{tpu_custom_call.1} parent=5 // pred_fallthru
        _
      %p139 = scmp.le.s32.totalorder 1, %s12
      %p140 = scmp.lt.s32.totalorder %s12, 3
      %p141 = pnand %p139, %p140
      %p142 = pneg %p141
      // Predicated region
      $region29: #{tpu_custom_call.1} parent=5 // pred_check
        _
      $region30: #{tpu_custom_call.1} parent=5 // pred_check_branch
        %144 = sbr.rel (%p141) target = $region32
      $region31: #{tpu_custom_call.1} parent=5 // pred_region
        %s145 = ssub.s32 %s12, 1
        %p146 = scmp.lt.s32.totalorder %s17, 1
        %s147 = scalar_select %p146, %s17, 1
        %s148 = smul.addr %s147, 15
        %s149 = smul.addr %s148, 8
        %s150 = scalar_lea.vmem %s0, %s149
        %p151 = pneg %p38
        %p152 = pneg %p35
        %p153 = pneg %p59
        %p154 = pneg %p56
        %p155 = pneg %p80
        %p156 = pneg %p77
        %p157 = pneg %p106
        %p158 = pneg %p103
        %s159 = sand.u32 %s93, 1
        %s160 = scalar_lea.sflag [#allocation3], %s159
        %s161 = sand.u32 %s93, 1
        %s162 = smul.addr %s161, 24
        %s163 = scalar_lea.vmem [#allocation2], %s162
        %p164 = scmp.lt.s32.totalorder %s17, 1
        %s165 = scalar_select %p164, %s17, 1
        %s166 = smul.addr %s165, 15
        %s167 = smul.addr %s166, 8
        %s168 = scalar_lea.vmem %s0, %s167
        %v169 = vld [vmem:[%s1] sm:$0xff]
        %v170 = vld [vmem:[%s168] sm:$0xff]
        %v171 = vld [vmem:[%s168 + $0x8] sm:$0xff]
        %v172 = vld [vmem:[%s168 + $0x10] sm:$0xff]
        %v173 = vld [vmem:[%s168 + $0x18] sm:$0xff]
        %v174 = vld [vmem:[%s168 + $0x20] sm:$0xff]
        %v175 = vld [vmem:[%s168 + $0x28] sm:$0xff]
        %v176 = vld [vmem:[%s168 + $0x30] sm:$0xff]
        %v177 = vld [vmem:[%s168 + $0x38] sm:$0xff]
        %v178 = vld [vmem:[%s168 + $0x40] sm:$0xff]
        %v179 = vld [vmem:[%s168 + $0x48] sm:$0xff]
        %v180 = vld [vmem:[%s168 + $0x50] sm:$0xff]
        %v181 = vld [vmem:[%s168 + $0x58] sm:$0xff]
        %v182 = vld [vmem:[%s168 + $0x60] sm:$0xf]
        %v183 = vld [vmem:[%s168 + $0x68] sm:$0xf]
        %v184 = vld [vmem:[%s168 + $0x70] sm:$0xf]
        %v185 = vld [vmem:[%s2] sm:$0xff]
        %187 = vset.pattern.permute.xlu0 0
        %188 = vperm.xlu0 %187, %v185
        %v189 = vpop.permute.xlu0 %188
        %vm191 = vcmask 293888
        %v193 = vsel %vm191, %v169, 0
        %vm195 = vcmask 1043456
        %v197 = vsel %vm195, %v182, 0
        %v200 = vsel %vm195, %v183, 0
        %v203 = vsel %vm195, %v184, 0
        %205 = vmatprep.subr.mxu0 %v171
        %206 = vmatpush1.msra.mxu0 %v170
        %207 = vmatprep.subr.mxu0 %v174
        %208 = vmatpush1.msra.mxu0 %v173
        %209 = vmatprep.subr.mxu0 %v177
        %210 = vmatpush1.msra.mxu0 %v176
        %211 = vmatprep.subr.mxu0 %v180
        %212 = vmatpush1.msra.mxu0 %v179
        %213 = vmatprep.subr.mxu0 %v200
        %214 = vmatpush1.msra.mxu0 %v197
        %215 = vmatprep.subr.mxu0 0.0
        %216 = vmatpush1.msra.mxu0 0.0
        %217 = vmatprep.subr.mxu0 0.0
        %218 = vmatpush1.msra.mxu0 0.0
        %219 = vmatprep.subr.mxu0 0.0
        %220 = vmatpush1.msra.mxu0 0.0
        %221 = vmatprep.subr.mxu0 0.0
        %222 = vmatpush1.msra.mxu0 0.0
        %223 = vmatprep.subr.mxu0 0.0
        %224 = vmatpush1.msra.mxu0 0.0
        %225 = vmatprep.subr.mxu0 0.0
        %226 = vmatpush1.msra.mxu0 0.0
        %227 = vmatprep.subr.mxu0 0.0
        %228 = vmatpush1.msra.mxu0 0.0
        %229 = vmatprep.subr.mxu0 0.0
        %230 = vmatpush1.msra.mxu0 0.0
        %231 = vmatprep.subr.mxu0 0.0
        %232 = vmatpush1.msra.mxu0 0.0
        %233 = vmatprep.subr.mxu0 0.0
        %234 = vmatpush1.msra.mxu0 0.0
        %235 = vmatprep.subr.mxu0 0.0
        %236 = vmatpush1.msra.mxu0 0.0
        %237 = vmatprep.subr.mxu0 0.0
        %238 = vmatpush1.msra.mxu0 0.0
        %239 = vmatprep.subr.mxu0 0.0
        %240 = vmatpush1.msra.mxu0 0.0
        %241 = vmatprep.subr.mxu0 0.0
        %242 = vmatpush1.msra.mxu0 0.0
        %243 = vmatprep.subr.mxu0 0.0
        %244 = vmatpush1.msra.mxu0 0.0
        %245 = vmatprep.subr.mxu0 0.0
        %246 = vmatpush1.msra.mxu0 0.0
        %247 = vmatprep.subr.mxu0 0.0
        %248 = vmatpush1.msra.mxu0 0.0
        %249 = vmatprep.subr.mxu0 0.0
        %250 = vmatpush1.msra.mxu0 0.0
        %251 = vmatprep.subr.mxu0 0.0
        %252 = vmatpush1.msra.mxu0 0.0
        %253 = vmatprep.subr.mxu0 0.0
        %254 = vmatpush1.msra.mxu0 0.0
        %255 = vmatprep.subr.mxu0 0.0
        %256 = vmatpush1.msra.mxu0 0.0
        %257 = vmatprep.subr.mxu0 0.0
        %258 = vmatpush1.msra.mxu0 0.0
        %259 = vmatprep.subr.mxu0 0.0
        %260 = vmatpush1.msra.mxu0 0.0
        %261 = vmatprep.subr.mxu0 0.0
        %262 = vmatpush1.msra.mxu0 0.0
        %263 = vmatprep.subr.mxu0 0.0
        %264 = vmatpush1.msra.mxu0 0.0
        %265 = vmatprep.subr.mxu0 0.0
        %266 = vmatpush1.msra.mxu0 0.0
        %267 = vmatprep.subr.mxu0 0.0
        %268 = vmatpush1.msra.mxu0 0.0
        %269 = vmatprep.mubr.f32.mxu0 0.0
        %270 = vmatmul.mubr.f32.gmra.mrb[0].mxu0 %v193
        %v271 = vpop.f32.mrb[0].mxu0
        %v272 = vadd.f32 %v189, %v271
        %v273 = vpop.f32.mrb[0].mxu0
        %v274 = vadd.f32 %v189, %v273
        %275 = vdwg.mxu0
        %276 = vmatprep.subr.mxu0 0.0
        %277 = vmatpush1.msra.mxu0 %v172
        %278 = vmatprep.subr.mxu0 0.0
        %279 = vmatpush1.msra.mxu0 %v175
        %280 = vmatprep.subr.mxu0 0.0
        %281 = vmatpush1.msra.mxu0 %v178
        %282 = vmatprep.subr.mxu0 0.0
        %283 = vmatpush1.msra.mxu0 %v181
        %284 = vmatprep.subr.mxu0 0.0
        %285 = vmatpush1.msra.mxu0 %v203
        %286 = vmatprep.subr.mxu0 0.0
        %287 = vmatpush1.msra.mxu0 0.0
        %288 = vmatprep.subr.mxu0 0.0
        %289 = vmatpush1.msra.mxu0 0.0
        %290 = vmatprep.subr.mxu0 0.0
        %291 = vmatpush1.msra.mxu0 0.0
        %292 = vmatprep.subr.mxu0 0.0
        %293 = vmatpush1.msra.mxu0 0.0
        %294 = vmatprep.subr.mxu0 0.0
        %295 = vmatpush1.msra.mxu0 0.0
        %296 = vmatprep.subr.mxu0 0.0
        %297 = vmatpush1.msra.mxu0 0.0
        %298 = vmatprep.subr.mxu0 0.0
        %299 = vmatpush1.msra.mxu0 0.0
        %300 = vmatprep.subr.mxu0 0.0
        %301 = vmatpush1.msra.mxu0 0.0
        %302 = vmatprep.subr.mxu0 0.0
        %303 = vmatpush1.msra.mxu0 0.0
        %304 = vmatprep.subr.mxu0 0.0
        %305 = vmatpush1.msra.mxu0 0.0
        %306 = vmatprep.subr.mxu0 0.0
        %307 = vmatpush1.msra.mxu0 0.0
        %308 = vmatprep.subr.mxu0 0.0
        %309 = vmatpush1.msra.mxu0 0.0
        %310 = vmatprep.subr.mxu0 0.0
        %311 = vmatpush1.msra.mxu0 0.0
        %312 = vmatprep.subr.mxu0 0.0
        %313 = vmatpush1.msra.mxu0 0.0
        %314 = vmatprep.subr.mxu0 0.0
        %315 = vmatpush1.msra.mxu0 0.0
        %316 = vmatprep.subr.mxu0 0.0
        %317 = vmatpush1.msra.mxu0 0.0
        %318 = vmatprep.subr.mxu0 0.0
        %319 = vmatpush1.msra.mxu0 0.0
        %320 = vmatprep.subr.mxu0 0.0
        %321 = vmatpush1.msra.mxu0 0.0
        %322 = vmatprep.subr.mxu0 0.0
        %323 = vmatpush1.msra.mxu0 0.0
        %324 = vmatprep.subr.mxu0 0.0
        %325 = vmatpush1.msra.mxu0 0.0
        %326 = vmatprep.subr.mxu0 0.0
        %327 = vmatpush1.msra.mxu0 0.0
        %328 = vmatprep.subr.mxu0 0.0
        %329 = vmatpush1.msra.mxu0 0.0
        %330 = vmatprep.subr.mxu0 0.0
        %331 = vmatpush1.msra.mxu0 0.0
        %332 = vmatprep.subr.mxu0 0.0
        %333 = vmatpush1.msra.mxu0 0.0
        %334 = vmatprep.subr.mxu0 0.0
        %335 = vmatpush1.msra.mxu0 0.0
        %336 = vmatprep.subr.mxu0 0.0
        %337 = vmatpush1.msra.mxu0 0.0
        %338 = vmatprep.subr.mxu0 0.0
        %339 = vmatpush1.msra.mxu0 0.0
        %340 = vmatprep.mubr.f32.mxu0 0.0
        %341 = vmatmul.mubr.f32.gmra.mrb[0].mxu0 %v193
        %v342 = vpop.f32.mrb[0].mxu0
        %v343 = vadd.f32 %v189, %v342
        %v344 = vpop.f32.mrb[0].mxu0
        %345 = vdwg.mxu0
        %346 = vst [vmem:[%s163] sm:$0xff] %v272
        %347 = vst [vmem:[%s163 + $0x8] sm:$0xff] %v274
        %vm348 = vcmask 261120
        %349 = vst.msk [vmem:[%s163 + $0x10] sm:$0xff] %vm348, %v343
        %s350 = sand.u32 %s93, 1
        %s351 = scalar_lea.sflag [#allocation3], %s350
        %s352 = sand.u32 %s93, 1
        %s353 = smul.addr %s352, 24
        %s354 = scalar_lea.vmem [#allocation2], %s353
        // Predicated region
        $region33: #{tpu_custom_call.1} parent=31 // pred_check
          %p355 = pneg %p103
        $region34: #{tpu_custom_call.1} parent=31 // pred_check_branch
          %357 = sbr.rel (%p355) target = $region36
        $region35: #{tpu_custom_call.1} parent=31 // pred_region
          %s359 = ssub.s32 384, 384
          %360 = vsyncadd %s351, %s359
          %s361 = smul.addr %s17, 3
          %s362 = smul.addr %s361, 128
          %s363 = scalar_lea.hbm %s3, %s362
          %s365 = sshll.u32 %s354, 4
          %s366 = int_to_ptr.vmem [resolvable:$true] %s365
          %368 = dma.vmem_to_hbm [thread:$0]  %s366, 384, %s363, %s351
        $region36: #{tpu_custom_call.1} parent=31 // pred_fallthru
          _
      $region32: #{tpu_custom_call.1} parent=5 // pred_fallthru
        _
      %p369 = scmp.le.s32.totalorder 2, %s12
      // Predicated region
      $region37: #{tpu_custom_call.1} parent=5 // pred_check
        %p370 = pneg %p369
      $region38: #{tpu_custom_call.1} parent=5 // pred_check_branch
        %372 = sbr.rel (%p370) target = $region40
      $region39: #{tpu_custom_call.1} parent=5 // pred_region
        %s373 = ssub.s32 %s12, 2
        // Predicated region
        $region41: #{tpu_custom_call.1} parent=39 // pred_check
          %p374 = pneg %p109
        $region42: #{tpu_custom_call.1} parent=39 // pred_check_branch
          %376 = sbr.rel (%p374) target = $region44
        $region43: #{tpu_custom_call.1} parent=39 // pred_region
          %s377 = sand.u32 %s94, 1
          %s378 = scalar_lea.sflag [#allocation3], %s377
          %s379 = sand.u32 %s94, 1
          %s380 = smul.addr %s379, 24
          %s381 = scalar_lea.vmem [#allocation2], %s380
          %382 = dma.done %s378, 384
        $region44: #{tpu_custom_call.1} parent=39 // pred_fallthru
          _
      $region40: #{tpu_custom_call.1} parent=5 // pred_fallthru
        _
    $region6: #{tpu_custom_call.1} parent=1 // loop_footer
      %s16 = sadd.s32 1, %s12
    $region7: #{tpu_custom_call.1} parent=1 // loop_footer_branch
      %11 = sbr.rel target = $region3
    $region8: #{tpu_custom_call.1} parent=1 // loop_exit
      _
    %383 = vsyncpa [#allocation3], 1
    %s384 = scalar_lea.sflag [#allocation3], 1
    %385 = vsyncpa %s384, 1

</llo_original>
